<compile_context>
chip_gen: v7x
topology: tpu7x:2x2x1
jax: 0.10.0
libtpu: 0.0.40
codegen_flags: <defaults>
</compile_context>

<pallas_src>
import jax
import jax.numpy as jnp
from jax.experimental import pallas as pl
from jax.experimental.pallas import tpu as pltpu

HIDDEN = 64
FEATURES = 16
BATCH = 8


def lstm_fc_kernel(x_ref, w_ref, p_ref, o_ref):
    """Fused single-step LSTM cell (zero state) + Linear + sigmoid.

    x_ref : (B, F)       input rows
    w_ref : (F, 3H)      input->gate weights, column order [i | o | g]
    p_ref : (2, 3H)      row 0 = gate bias (b_ih + b_hh, [i|o|g] order)
                         row 1 = [ w_fc (H) | b_fc (1) | zero pad ]
    o_ref : (B, 1)       sigmoid(fc(h))
    """
    H = HIDDEN
    # Single MXU matmul: (B, F) x (F, 3H) -> (B, 3H).
    gates = jnp.dot(x_ref[...], w_ref[...],
                    preferred_element_type=jnp.float32)
    gates = gates + p_ref[0:1, :]                      # broadcast bias row

    io = jax.nn.sigmoid(gates[:, :2 * H])              # i|o: one 128-lane pass
    i_g = io[:, :H]
    o_g = io[:, H:]
    g_g = jnp.tanh(gates[:, 2 * H:])

    # c0 == 0 -> c = i * g ; forget gate removed entirely.
    h = o_g * jnp.tanh(i_g * g_g)                      # (B, H)

    # FC layer as VPU multiply + lane reduction (avoids N=1 MXU matmul).
    w_fc = p_ref[1:2, :H]                              # (1, H) lane-dense
    b_fc = p_ref[1:2, H:H + 1]                         # (1, 1)
    logits = jnp.sum(h * w_fc, axis=-1, keepdims=True) + b_fc
    o_ref[...] = jax.nn.sigmoid(logits)                # (B, 1)


def prepare_params(w_ih, b_ih, b_hh, w_fc, b_fc):
    """One-time parameter repack (keep out of the per-call hot path).

    PyTorch nn.LSTM weight layout: rows of w_ih are [i; f; g; o], each H.
    We drop the dead f gate and re-pack columns as [i | o | g].
    """
    H = HIDDEN
    w_ih_t = jnp.transpose(w_ih)                       # (F, 4H), cols [i|f|g|o]
    w_gates = jnp.concatenate(
        [w_ih_t[:, 0 * H:1 * H],                       # i
         w_ih_t[:, 3 * H:4 * H],                       # o
         w_ih_t[:, 2 * H:3 * H]],                      # g
        axis=1).astype(jnp.float32)                    # (F, 3H)

    b = (b_ih + b_hh).astype(jnp.float32)              # h0 == 0 -> only biases
    b_gates = jnp.concatenate([b[0 * H:1 * H], b[3 * H:4 * H], b[2 * H:3 * H]])

    fc_row = jnp.concatenate(
        [w_fc.reshape(-1).astype(jnp.float32),
         b_fc.reshape(-1).astype(jnp.float32),
         jnp.zeros((3 * H - H - 1,), jnp.float32)])    # (3H,)

    small = jnp.stack([b_gates, fc_row], axis=0)       # (2, 3H)
    return w_gates, small


def lstm_model_forward(x, w_gates, small):
    """x: (B, F) float32 (== x.view(-1, 1, F) with seq_len 1). Returns (B, 1)."""
    B = x.shape[0]
    vmem = pl.BlockSpec(memory_space=pltpu.MemorySpace.VMEM)
    # TODO(synk): if batch grows well beyond a few rows, add a batch grid axis
    # (parallel) and emit a lane-dense output slab instead of (B, 1).
    return pl.pallas_call(
        lstm_fc_kernel,
        out_shape=jax.ShapeDtypeStruct((B, 1), jnp.float32),
        in_specs=[vmem, vmem, vmem],
        out_specs=vmem,
    )(x, w_gates, small)


def reference_forward(x, w_ih, b_ih, w_hh, b_hh, w_fc, b_fc):
    """Plain-JAX reference mirroring torch.nn.LSTM (seq_len=1, zero h0/c0)."""
    H = HIDDEN
    h0 = jnp.zeros((x.shape[0], H), jnp.float32)
    c0 = jnp.zeros((x.shape[0], H), jnp.float32)
    gates = x @ w_ih.T + h0 @ w_hh.T + b_ih + b_hh
    i_g = jax.nn.sigmoid(gates[:, 0 * H:1 * H])
    f_g = jax.nn.sigmoid(gates[:, 1 * H:2 * H])
    g_g = jnp.tanh(gates[:, 2 * H:3 * H])
    o_g = jax.nn.sigmoid(gates[:, 3 * H:4 * H])
    c = f_g * c0 + i_g * g_g
    h = o_g * jnp.tanh(c)
    return jax.nn.sigmoid(h @ w_fc.T + b_fc)


if __name__ == "__main__":
    key = jax.random.PRNGKey(0)
    kx, k1, k2, k3, k4, k5, k6 = jax.random.split(key, 7)

    # Deterministic synthetic parameters (PyTorch nn.LSTM / nn.Linear shapes).
    scale = 0.1
    x = jax.random.normal(kx, (BATCH, FEATURES), dtype=jnp.float32)
    w_ih = scale * jax.random.normal(k1, (4 * HIDDEN, FEATURES), jnp.float32)
    w_hh = scale * jax.random.normal(k2, (4 * HIDDEN, HIDDEN), jnp.float32)
    b_ih = scale * jax.random.normal(k3, (4 * HIDDEN,), jnp.float32)
    b_hh = scale * jax.random.normal(k4, (4 * HIDDEN,), jnp.float32)
    w_fc = scale * jax.random.normal(k5, (1, HIDDEN), jnp.float32)
    b_fc = scale * jax.random.normal(k6, (1,), jnp.float32)

    # One-time parameter repack (w_hh is unused: h0 == 0 kills its term).
    w_gates, small = prepare_params(w_ih, b_ih, b_hh, w_fc, b_fc)
    w_gates, small = jax.block_until_ready((w_gates, small))

    out = lstm_model_forward(x, w_gates, small)
    out = jax.block_until_ready(out)

    ref = reference_forward(x, w_ih, b_ih, w_hh, b_hh, w_fc, b_fc)
    assert out.shape == (BATCH, 1), out.shape
    assert jnp.allclose(out, ref, rtol=1e-5, atol=1e-5), (out, ref)

    print("KERNEL_OK")
</pallas_src>

<mosaic_0001>
module attributes {stable_mosaic.version = 11 : i64} {
  func.func @lstm_fc_kernel(%arg0: memref<8x16xf32, #tpu.memory_space<vmem>>, %arg1: memref<16x192xf32, #tpu.memory_space<vmem>>, %arg2: memref<2x192xf32, #tpu.memory_space<vmem>>, %arg3: memref<8x1xf32, #tpu.memory_space<vmem>>) attributes {dimension_semantics = [], scalar_prefetch = 0 : i64, scratch_operands = 0 : i64, tpu.core_type = #tpu.core_type<tc>} {
    %c0 = arith.constant 0 : index
    %c0_0 = arith.constant 0 : index
    %0 = vector.load %arg0[%c0, %c0_0] : memref<8x16xf32, #tpu.memory_space<vmem>>, vector<8x16xf32>
    %c0_1 = arith.constant 0 : index
    %c0_2 = arith.constant 0 : index
    %1 = vector.load %arg1[%c0_1, %c0_2] : memref<16x192xf32, #tpu.memory_space<vmem>>, vector<16x192xf32>
    %cst = arith.constant dense<0.000000e+00> : vector<8x192xf32>
    %2 = tpu.matmul %0, %1, %cst {dimension_numbers = #tpu.dot_dimension_numbers<[1], [0], [0], [1], [0, 0, 1, 1], [], []>} : vector<8x16xf32>, vector<16x192xf32>, vector<8x192xf32> -> vector<8x192xf32>
    %c0_3 = arith.constant 0 : index
    %c0_4 = arith.constant 0 : index
    %3 = vector.load %arg2[%c0_3, %c0_4] : memref<2x192xf32, #tpu.memory_space<vmem>>, vector<1x192xf32>
    %4 = vector.broadcast %3 : vector<1x192xf32> to vector<8x192xf32>
    %5 = arith.addf %2, %4 : vector<8x192xf32>
    %6 = vector.extract_strided_slice %5 {offsets = [0, 0], sizes = [8, 128], strides = [1, 1]} : vector<8x192xf32> to vector<8x128xf32>
    %7 = arith.negf %6 : vector<8x128xf32>
    %8 = math.exp %7 : vector<8x128xf32>
    %cst_5 = arith.constant 1.000000e+00 : f32
    %9 = vector.broadcast %cst_5 : f32 to vector<8x128xf32>
    %10 = arith.addf %9, %8 : vector<8x128xf32>
    %11 = arith.divf %9, %10 : vector<8x128xf32>
    %12 = vector.extract_strided_slice %11 {offsets = [0, 0], sizes = [8, 64], strides = [1, 1]} : vector<8x128xf32> to vector<8x64xf32>
    %13 = vector.extract_strided_slice %11 {offsets = [0, 64], sizes = [8, 64], strides = [1, 1]} : vector<8x128xf32> to vector<8x64xf32>
    %14 = vector.extract_strided_slice %5 {offsets = [0, 128], sizes = [8, 64], strides = [1, 1]} : vector<8x192xf32> to vector<8x64xf32>
    %15 = math.tanh %14 : vector<8x64xf32>
    %16 = arith.mulf %12, %15 : vector<8x64xf32>
    %17 = math.tanh %16 : vector<8x64xf32>
    %18 = arith.mulf %13, %17 : vector<8x64xf32>
    %c1 = arith.constant 1 : index
    %c0_6 = arith.constant 0 : index
    %19 = vector.load %arg2[%c1, %c0_6] : memref<2x192xf32, #tpu.memory_space<vmem>>, vector<1x64xf32>
    %c1_7 = arith.constant 1 : index
    %c64 = arith.constant 64 : index
    %20 = vector.load %arg2[%c1_7, %c64] : memref<2x192xf32, #tpu.memory_space<vmem>>, vector<1x1xf32>
    %21 = vector.broadcast %19 : vector<1x64xf32> to vector<8x64xf32>
    %22 = arith.mulf %18, %21 : vector<8x64xf32>
    %cst_8 = arith.constant dense<0.000000e+00> : vector<8xf32>
    %23 = vector.multi_reduction <add>, %22, %cst_8 [1] : vector<8x64xf32> to vector<8xf32>
    %24 = vector.shape_cast %23 : vector<8xf32> to vector<8x1xf32>
    %25 = vector.broadcast %20 : vector<1x1xf32> to vector<8x1xf32>
    %26 = arith.addf %24, %25 : vector<8x1xf32>
    %27 = arith.negf %26 : vector<8x1xf32>
    %28 = math.exp %27 : vector<8x1xf32>
    %cst_9 = arith.constant 1.000000e+00 : f32
    %29 = vector.broadcast %cst_9 : f32 to vector<8x1xf32>
    %30 = arith.addf %29, %28 : vector<8x1xf32>
    %31 = arith.divf %29, %30 : vector<8x1xf32>
    %c0_10 = arith.constant 0 : index
    %c0_11 = arith.constant 0 : index
    %32 = vector.load %arg3[%c0_10, %c0_11] : memref<8x1xf32, #tpu.memory_space<vmem>>, vector<8x1xf32>
    tpu.vector_store %arg3[%c0_10, %c0_11], %31 {strides = array<i32>} : memref<8x1xf32, #tpu.memory_space<vmem>>, vector<8x1xf32>,
    return
  }
}

</mosaic_0001>

<llo_original>
// kernel: tpu_custom_call.1
$region0: #{tpu_custom_call.1}
  #allocation0 [shape = 'u32[]', space=smem, size = 0x4, offset = 0x4, fixed_abs, tag = 'smem constant byte address 0x4 - core index']
  #allocation1 [shape = 'u32[144,128]{1,0:T(1,128)}', space=vmem, size = 0x12000, scoped, tag = 'internal scratch']
  %s0 = inlined_call_operand.hbm [shape: f32[8,16], index: 0, kind: input, shape index: {}]
  %s1 = inlined_call_operand.hbm [shape: f32[16,192], index: 1, kind: input, shape index: {}]
  %s2 = inlined_call_operand.vmem [shape: f32[2,192], index: 2, kind: input, shape index: {}]
  %s3 = inlined_call_operand.vmem [shape: f32[8,1], index: 3, kind: output, shape index: {}]
  %s4 = sld [smem:[#allocation0]]
  $region30: #{tpu_custom_call.1} parent=0
    _
  %s6 = ssub.s32 1, %s4
  %s7 = scalar_select 0, %s6, %s4
  $region1: #{tpu_custom_call.1} parent=0
    #allocation2 [shape = 'u8[4096]{0}', space=vmem, size = 0x1000, scoped, tag = 'input window, operand 0, single buffered']
    #allocation3 [shape = 's32[1]{0}', space=sflag, size = 0x4, scoped, tag = 'scoped memory for tpu_custom_call.1']
    #allocation4 [shape = 'u8[16384]{0}', space=vmem, size = 0x4000, scoped, tag = 'input window, operand 1, single buffered']
    #allocation5 [shape = 's32[1]{0}', space=sflag, size = 0x4, scoped, tag = 'scoped memory for tpu_custom_call.1']
    %8 = vsyncpa [#allocation3], 0
    %9 = vsyncpa [#allocation5], 0
    // Predicated region
    $region2: #{tpu_custom_call.1} parent=1 // pred_check
      _
    $region3: #{tpu_custom_call.1} parent=1 // pred_check_branch
      %11 = sbr.rel (0) target = $region5
    $region4: #{tpu_custom_call.1} parent=1 // pred_region
      %s13 = ssub.s32 128, 128
      %14 = vsyncadd [#allocation3], %s13
      %s16 = sshll.u32 [#allocation2], 4
      %s17 = int_to_ptr.vmem [resolvable:$true] %s16
      %19 = dma.hbm_to_vmem [thread:$0]  %s0, 128, %s17, [#allocation3]
    $region5: #{tpu_custom_call.1} parent=1 // pred_fallthru
      _
    // Predicated region
    $region6: #{tpu_custom_call.1} parent=1 // pred_check
      _
    $region7: #{tpu_custom_call.1} parent=1 // pred_check_branch
      %21 = sbr.rel (0) target = $region9
    $region8: #{tpu_custom_call.1} parent=1 // pred_region
      %s23 = ssub.s32 512, 512
      %24 = vsyncadd [#allocation5], %s23
      %s25 = sshll.u32 [#allocation4], 4
      %s26 = int_to_ptr.vmem [resolvable:$true] %s25
      %31 = dma.hbm_to_vmem [thread:$0]  %s1, 512, %s26, [#allocation5], 256, 256, 16
    $region9: #{tpu_custom_call.1} parent=1 // pred_fallthru
      _
    // Predicated region
    $region10: #{tpu_custom_call.1} parent=1 // pred_check
      _
    $region11: #{tpu_custom_call.1} parent=1 // pred_check_branch
      %33 = sbr.rel (0) target = $region13
    $region12: #{tpu_custom_call.1} parent=1 // pred_region
      _
    $region13: #{tpu_custom_call.1} parent=1 // pred_fallthru
      _
    // Predicated region
    $region14: #{tpu_custom_call.1} parent=1 // pred_check
      _
    $region15: #{tpu_custom_call.1} parent=1 // pred_check_branch
      %35 = sbr.rel (0) target = $region17
    $region16: #{tpu_custom_call.1} parent=1 // pred_region
      %36 = dma.done [#allocation3], 128
    $region17: #{tpu_custom_call.1} parent=1 // pred_fallthru
      _
    // Predicated region
    $region18: #{tpu_custom_call.1} parent=1 // pred_check
      _
    $region19: #{tpu_custom_call.1} parent=1 // pred_check_branch
      %38 = sbr.rel (0) target = $region21
    $region20: #{tpu_custom_call.1} parent=1 // pred_region
      %39 = dma.done [#allocation5], 512
    $region21: #{tpu_custom_call.1} parent=1 // pred_fallthru
      _
    %v40 = vld [vmem:[#allocation2] sm:$0xff]
    %v41 = vld [vmem:[#allocation4] sm:$0xff]
    %v42 = vld [vmem:[#allocation4 + $0x8] sm:$0xff]
    %v43 = vld [vmem:[#allocation4 + $0x10] sm:$0xff]
    %v44 = vld [vmem:[#allocation4 + $0x18] sm:$0xff]
    %v45 = vld [vmem:[%s2] ss:$2 sm:$0x3]
    %v47 = vlaneseq
    %v48 = vshrl.u32 %v47, 7
    %v49 = vsub.s32 0, %v48
    %v50 = vrot.slane %v45, %v49
    %v51 = vlaneseq
    %v52 = vshrl.u32 %v51, 7
    %v53 = vsub.s32 1, %v52
    %v54 = vrot.slane %v45, %v53
    %vm57 = vcmask 130048
    %v59 = vsel %vm57, %v40, 0
    %61 = vmatprep.subr.mxu0 %v42
    %62 = vmatpush1.msra.mxu0 %v41
    %63 = vmatprep.subr.mxu0 %v44
    %64 = vmatpush1.msra.mxu0 %v43
    %65 = vmatprep.subr.mxu0 0.0
    %66 = vmatpush1.msra.mxu0 0.0
    %67 = vmatprep.subr.mxu0 0.0
    %68 = vmatpush1.msra.mxu0 0.0
    %69 = vmatprep.subr.mxu0 0.0
    %70 = vmatpush1.msra.mxu0 0.0
    %71 = vmatprep.subr.mxu0 0.0
    %72 = vmatpush1.msra.mxu0 0.0
    %73 = vmatprep.subr.mxu0 0.0
    %74 = vmatpush1.msra.mxu0 0.0
    %75 = vmatprep.subr.mxu0 0.0
    %76 = vmatpush1.msra.mxu0 0.0
    %77 = vmatprep.subr.mxu0 0.0
    %78 = vmatpush1.msra.mxu0 0.0
    %79 = vmatprep.subr.mxu0 0.0
    %80 = vmatpush1.msra.mxu0 0.0
    %81 = vmatprep.subr.mxu0 0.0
    %82 = vmatpush1.msra.mxu0 0.0
    %83 = vmatprep.subr.mxu0 0.0
    %84 = vmatpush1.msra.mxu0 0.0
    %85 = vmatprep.subr.mxu0 0.0
    %86 = vmatpush1.msra.mxu0 0.0
    %87 = vmatprep.subr.mxu0 0.0
    %88 = vmatpush1.msra.mxu0 0.0
    %89 = vmatprep.subr.mxu0 0.0
    %90 = vmatpush1.msra.mxu0 0.0
    %91 = vmatprep.subr.mxu0 0.0
    %92 = vmatpush1.msra.mxu0 0.0
    %93 = vmatprep.subr.mxu0 0.0
    %94 = vmatpush1.msra.mxu0 0.0
    %95 = vmatprep.subr.mxu0 0.0
    %96 = vmatpush1.msra.mxu0 0.0
    %97 = vmatprep.subr.mxu0 0.0
    %98 = vmatpush1.msra.mxu0 0.0
    %99 = vmatprep.subr.mxu0 0.0
    %100 = vmatpush1.msra.mxu0 0.0
    %101 = vmatprep.subr.mxu0 0.0
    %102 = vmatpush1.msra.mxu0 0.0
    %103 = vmatprep.subr.mxu0 0.0
    %104 = vmatpush1.msra.mxu0 0.0
    %105 = vmatprep.subr.mxu0 0.0
    %106 = vmatpush1.msra.mxu0 0.0
    %107 = vmatprep.subr.mxu0 0.0
    %108 = vmatpush1.msra.mxu0 0.0
    %109 = vmatprep.subr.mxu0 0.0
    %110 = vmatpush1.msra.mxu0 0.0
    %111 = vmatprep.subr.mxu0 0.0
    %112 = vmatpush1.msra.mxu0 0.0
    %113 = vmatprep.subr.mxu0 0.0
    %114 = vmatpush1.msra.mxu0 0.0
    %115 = vmatprep.subr.mxu0 0.0
    %116 = vmatpush1.msra.mxu0 0.0
    %117 = vmatprep.subr.mxu0 0.0
    %118 = vmatpush1.msra.mxu0 0.0
    %119 = vmatprep.subr.mxu0 0.0
    %120 = vmatpush1.msra.mxu0 0.0
    %121 = vmatprep.subr.mxu0 0.0
    %122 = vmatpush1.msra.mxu0 0.0
    %123 = vmatprep.subr.mxu0 0.0
    %124 = vmatpush1.msra.mxu0 0.0
    %125 = vmatprep.mubr.f32.mxu0 0.0
    %126 = vmatmul.mubr.f32.gmra.mrb[0].mxu0 %v59
    %v127 = vpop.f32.mrb[0].mxu0
    %v128 = vadd.f32 %v50, %v127
    %v129 = vpop.f32.mrb[0].mxu0
    %v130 = vadd.f32 %v54, %v129
    %131 = vdwg.mxu0
    %v132 = vxor.u32 %v128, 2147483648
    %v133 = vmul.f32 %v132, 1.442695
    %v134 = vpow.pop %v133
    %v135 = vadd.f32 %v134, 1.0
    %v136 = vrcp.pop %v135
    %v137 = vmul.f32 1.0, %v136
    %v138 = vtanh.pop %v130
    %v139 = vmul.f32 %v137, %v138
    %v140 = vtanh.pop %v139
    %142 = vrot.lane.b32.xlu0 %v140, 64
    %v143 = vpop.permute.xlu0 %142
    %v145 = vmul.f32 %v137, %v143
    %v146 = vld [vmem:[%s2 + $0x1] sm:$0x1]
    %v147 = vlaneseq
    %v148 = vshrl.u32 %v147, 7
    %v149 = vsub.s32 0, %v148
    %v150 = vrot.slane %v146, %v149
    %152 = vrot.lane.b32.xlu0 %v150, 64
    %v153 = vpop.permute.xlu0 %152
    %v155 = vmul.f32 %v145, %v153
    %157 = vrot.lane.b32.xlu0 %v155, 64
    %v158 = vpop.permute.xlu0 %157
    %vm160 = vcmask 523264
    %v161 = vsel %vm160, %v158, 0.0
    %162 = vadd.xlane.f32.xlu0 %v161
    %v163 = vpop.xlane.xlu0 %162
    %v164 = vadd.f32 %v163, %v150
    %v165 = vxor.u32 %v164, 2147483648
    %v166 = vmul.f32 %v165, 1.442695
    %v167 = vpow.pop %v166
    %v168 = vadd.f32 %v167, 1.0
    %v169 = vrcp.pop %v168
    %v170 = vmul.f32 1.0, %v169
    %172 = vrot.lane.b32.xlu0 %v170, 64
    %v173 = vpop.permute.xlu0 %172
    %vm175 = vcmask 7168
    %176 = vst.msk [vmem:[%s3] sm:$0xff] %vm175, %v173
    // Predicated region
    $region22: #{tpu_custom_call.1} parent=1 // pred_check
      _
    $region23: #{tpu_custom_call.1} parent=1 // pred_check_branch
      %178 = sbr.rel (0) target = $region25
    $region24: #{tpu_custom_call.1} parent=1 // pred_region
      _
    $region25: #{tpu_custom_call.1} parent=1 // pred_fallthru
      _
    // Predicated region
    $region26: #{tpu_custom_call.1} parent=1 // pred_check
      _
    $region27: #{tpu_custom_call.1} parent=1 // pred_check_branch
      %180 = sbr.rel (0) target = $region29
    $region28: #{tpu_custom_call.1} parent=1 // pred_region
      _
    $region29: #{tpu_custom_call.1} parent=1 // pred_fallthru
      _
    %181 = vsyncpa [#allocation3], 1
    %182 = vsyncpa [#allocation5], 1

</llo_original>
